<compile_context>
chip_gen: v5e
topology: v5e:2x2
jax: 0.10.0
libtpu: 0.0.40
codegen_flags: <defaults>
</compile_context>

<pallas_src>
import functools

import jax
import jax.numpy as jnp
import numpy as np
from jax.experimental import pallas as pl
from jax.experimental.pallas import tpu as pltpu


# ------------------------- pltpu.roll direction probe ------------------------

@functools.lru_cache(maxsize=None)
def _roll_matches_jnp():
    """True iff pltpu.roll(x, s, axis) == jnp.roll(x, s, axis).

    One-off probe kernel so the 3x3-conv tap shifts stay correct regardless of
    the lane-rotation direction convention of the installed jax version.
    ensure_compile_time_eval keeps the probe out of any ambient jit trace
    (robustness for jit-only entry points); __main__ also pre-warms the cache.
    """
    def probe(x_ref, o_ref):
        o_ref[...] = pltpu.roll(x_ref[...], shift=1, axis=1)

    with jax.ensure_compile_time_eval():
        x = jax.lax.broadcasted_iota(jnp.float32, (8, 128), 1)
        y = pl.pallas_call(
            probe, out_shape=jax.ShapeDtypeStruct((8, 128), jnp.float32))(x)
        return bool(jax.device_get(y)[0, 0] == 127.0)


# --------------------------------- the kernel --------------------------------

def _down2_kernel(xp_ref, xq_ref, mask_ref,
                  wAp_ref, wAq_ref, bA_ref, w2a_ref, b2a_ref, w3a_ref, b3a_ref,
                  wB_ref, bB_ref, w2b_ref, b2b_ref, w3b_ref, b3b_ref,
                  o_ref, tapA_ref, tapB_ref, *, H, W, Cm1p, Cm2p):
    """Fused Down2 for one image: (pool/concat folded) -> Bottleneck1 -> Bottleneck2.

    All activations stay in VMEM; the only HBM traffic per grid step is the two
    input image blocks and the final output block.  Matmul operands use the
    weight dtype (bf16 on the fast path); accumulation and elementwise work is f32.
    """
    cd = w2a_ref.dtype                      # compute (matmul operand) dtype
    hw = H * W
    masks = mask_ref[...]                   # (9, 1, hw) f32 {0,1} border masks

    def conv3x3(tap_ref, w2m_ref, b2_ref, h):
        # 3x3 conv, stride 1, pad 1, on a whole-image (C, H*W) activation.
        # The 9 lane-rotated + masked taps are stacked into VMEM scratch and
        # contracted in ONE (C, 9C) @ (9C, hw) MXU matmul.
        C, _ = h.shape
        sign = -1 if _roll_matches_jnp() else 1
        for dh in range(3):
            for dw in range(3):
                t = dh * 3 + dw
                s = (dh - 1) * W + (dw - 1)            # flat source offset
                tap = h if s == 0 else pltpu.roll(h, shift=(sign * s) % hw,
                                                  axis=1)
                # {0,1} mask gives zero-padding semantics at the image border
                # and kills every cyclic wrap of the roll (whole-image blocks).
                tap_ref[t * C:(t + 1) * C, :] = tap * masks[t]
        return (jnp.dot(w2m_ref[...], tap_ref[...].astype(cd),
                        preferred_element_type=jnp.float32) + b2_ref[...])

    def bottleneck(x_parts, wA_refs, bA, w2m_ref, b2_ref, w3_ref, b3_ref,
                   tap_ref, Cmp):
        # First 1x1 conv and 1x1 shortcut stacked into one weight matrix;
        # split across input parts so the channel concat never materializes.
        acc = bA[...]                                           # (Cmp+Co, 1) f32
        for xv, wref in zip(x_parts, wA_refs):
            acc = acc + jnp.dot(wref[...], xv,
                                preferred_element_type=jnp.float32)
        h1 = jnp.maximum(acc[:Cmp], 0.0)                        # (Cmp, hw) main
        sc = acc[Cmp:]                                          # (Co, hw) shortcut
        h2 = jnp.maximum(conv3x3(tap_ref, w2m_ref, b2_ref, h1), 0.0)
        out = (jnp.dot(w3_ref[...], h2.astype(cd),
                       preferred_element_type=jnp.float32) + b3_ref[...] + sc)
        return jnp.maximum(out, 0.0)                            # residual ReLU

    xp = xp_ref[0].astype(cd)                                   # (Cp, hw)
    xq = xq_ref[0].astype(cd)                                   # (Cx, hw) pooled

    out1 = bottleneck([xp, xq], [wAp_ref, wAq_ref], bA_ref,
                      w2a_ref, b2a_ref, w3a_ref, b3a_ref, tapA_ref, Cm1p)
    out2 = bottleneck([out1.astype(cd)], [wB_ref], bB_ref,
                      w2b_ref, b2b_ref, w3b_ref, b3b_ref, tapB_ref, Cm2p)

    o_ref[0] = out2.astype(o_ref.dtype)


# ---------------------------- wrapper-side helpers ----------------------------

def _ceil8(x):
    return max(8, -(-x // 8) * 8)


def _tap_masks(H, W):
    """(9, 1, H*W) {0,1} f32 masks (built in numpy; folded to a constant)."""
    hw = H * W
    col = np.arange(hw) % W
    row = np.arange(hw) // W
    m = np.zeros((9, 1, hw), np.float32)
    for dh in range(3):
        for dw in range(3):
            oh, ow = dh - 1, dw - 1
            m[dh * 3 + dw, 0] = ((col + ow >= 0) & (col + ow < W) &
                                 (row + oh >= 0) & (row + oh < H)
                                 ).astype(np.float32)
    return jnp.asarray(m)


def _prep_bottleneck(p, part_channels, compute_dtype):
    """Fold a Bottleneck's 1x1/3x3 weights into MXU-friendly matrices.

    * w1 (first 1x1) and wd (1x1 shortcut) are stacked into one (Cmp+Co, Cin)
      matrix (one matmul instead of two), split per input part.
    * the 3x3 weight becomes a (Cmp, 9*Cmp) matrix matching the in-kernel
      9-tap stack ordering (tap-major, input-channel fastest).
    * mid channels are zero-padded to a multiple of 8 so sublane slices and
      scratch stores stay (8,128)-tile aligned; padding is numerically exact.
    """
    cd = compute_dtype
    Cm, Cin = p['w1'].shape[:2]
    Co = p['w3'].shape[0]
    Cmp = _ceil8(Cm)
    pm = Cmp - Cm

    w1m = jnp.pad(p['w1'].reshape(Cm, Cin), ((0, pm), (0, 0)))
    wdm = p['wd'].reshape(Co, Cin)
    wA = jnp.concatenate([w1m, wdm], axis=0).astype(cd)         # (Cmp+Co, Cin)
    bA = jnp.concatenate([jnp.pad(p['b1'], (0, pm)), p['bd']]
                         ).reshape(-1, 1).astype(jnp.float32)

    w2 = jnp.pad(p['w2'], ((0, pm), (0, pm), (0, 0), (0, 0)))   # (Cmp,Cmp,3,3)
    w2m = jnp.transpose(w2, (0, 2, 3, 1)).reshape(Cmp, 9 * Cmp).astype(cd)
    b2 = jnp.pad(p['b2'], (0, pm)).reshape(-1, 1).astype(jnp.float32)

    w3 = jnp.pad(p['w3'].reshape(Co, Cm), ((0, 0), (0, pm))).astype(cd)
    b3 = p['b3'].reshape(-1, 1).astype(jnp.float32)

    wA_parts, off = [], 0
    for c in part_channels:
        wA_parts.append(wA[:, off:off + c])
        off += c
    assert off == Cin, (off, Cin)
    return dict(wA_parts=wA_parts, bA=bA, w2m=w2m, b2=b2, w3=w3, b3=b3,
                Cmp=Cmp, Co=Co)


def down2_forward(params, x_prev_nchw, x_nchw, *, do_pool=True,
                  compute_dtype=jnp.bfloat16):
    """Down2.forward: pool(x) -> cat((x_prev, x), dim=1) -> Bottleneck x2.

    One pallas_call for the whole block; grid iterates over images
    ("parallel").  The only wrapper-side work on activation-sized data is the
    2x2 max-pool; every reshape is contiguous (no transposes in or out).
    """
    N, Cp, H, W = x_prev_nchw.shape
    hw = H * W
    cd = compute_dtype

    # MaxPool2d(2) in the wrapper (one reduce; no 4-corner DMA into the kernel).
    if do_pool:
        Nx, Cx, H2, W2 = x_nchw.shape
        Hp, Wp = H2 // 2, W2 // 2                     # floor, like MaxPool2d(2)
        xq = jnp.max(
            x_nchw[:, :, :2 * Hp, :2 * Wp].reshape(Nx, Cx, Hp, 2, Wp, 2),
            axis=(3, 5))
    else:
        Nx, Cx, Hp, Wp = x_nchw.shape
        xq = x_nchw
    assert (Nx, Hp, Wp) == (N, H, W), "x (after pool) must match x_prev"

    # Free (contiguous) reshapes: NCHW -> (N, C, H*W).  No transposes anywhere.
    xp = x_prev_nchw.reshape(N, Cp, hw)
    xq = xq.reshape(N, Cx, hw)

    blk1 = _prep_bottleneck(params['block1'], (Cp, Cx), cd)
    blk2 = _prep_bottleneck(params['block2'], (blk1['Co'],), cd)
    masks = _tap_masks(H, W)
    Cout = blk2['Co']

    weights = (blk1['wA_parts'][0], blk1['wA_parts'][1], blk1['bA'],
               blk1['w2m'], blk1['b2'], blk1['w3'], blk1['b3'],
               blk2['wA_parts'][0], blk2['bA'],
               blk2['w2m'], blk2['b2'], blk2['w3'], blk2['b3'])

    def full(a):
        nd = a.ndim
        return pl.BlockSpec(a.shape, lambda i, _nd=nd: (0,) * _nd)

    in_specs = ([pl.BlockSpec((1, Cp, hw), lambda i: (i, 0, 0)),
                 pl.BlockSpec((1, Cx, hw), lambda i: (i, 0, 0)),
                 full(masks)]
                + [full(w) for w in weights])

    # NOTE: for very large C / spatial sizes on v7x (64 MiB VMEM), switch to a
    # row-tiled grid with a 1-row halo for the 3x3 and set vmem_limit_bytes.
    out = pl.pallas_call(
        functools.partial(_down2_kernel, H=H, W=W,
                          Cm1p=blk1['Cmp'], Cm2p=blk2['Cmp']),
        grid=(N,),
        in_specs=in_specs,
        out_specs=pl.BlockSpec((1, Cout, hw), lambda i: (i, 0, 0)),
        out_shape=jax.ShapeDtypeStruct((N, Cout, hw), x_prev_nchw.dtype),
        scratch_shapes=[pltpu.VMEM((9 * blk1['Cmp'], hw), jnp.float32),
                        pltpu.VMEM((9 * blk2['Cmp'], hw), jnp.float32)],
        compiler_params=pltpu.CompilerParams(
            dimension_semantics=("parallel",)),
    )(xp, xq, masks, *weights)

    return out.reshape(N, Cout, H, W)                 # free reshape -> NCHW


# ----------------------------------- params -----------------------------------

def init_bottleneck(key, cin, cmid, expansion):
    cout = cmid * expansion
    ks = jax.random.split(key, 4)

    def w(k, co, ci, kh, kw):
        fan_in = ci * kh * kw
        return jax.random.normal(k, (co, ci, kh, kw), jnp.float32) / np.sqrt(fan_in)

    bn_scale = np.float32(1.0 / np.sqrt(1.0 + 1e-5))  # eval-mode BN, default stats
    zeros = lambda c: jnp.zeros((c,), jnp.float32)
    return {
        'w1': w(ks[0], cmid, cin, 1, 1) * bn_scale, 'b1': zeros(cmid),
        'w2': w(ks[1], cmid, cmid, 3, 3) * bn_scale, 'b2': zeros(cmid),
        'w3': w(ks[2], cout, cmid, 1, 1) * bn_scale, 'b3': zeros(cout),
        'wd': w(ks[3], cout, cin, 1, 1) * bn_scale, 'bd': zeros(cout),
    }


# -------------------------- pure-JAX reference (check) ------------------------

def _ref_conv2d(x, w_oihw, b, pad):
    y = jax.lax.conv_general_dilated(
        x, jnp.transpose(w_oihw, (2, 3, 1, 0)),
        window_strides=(1, 1), padding=[(pad, pad), (pad, pad)],
        dimension_numbers=('NHWC', 'HWIO', 'NHWC'))
    return y + b.reshape(1, 1, 1, -1)


def _ref_bottleneck(p, x):
    sc = _ref_conv2d(x, p['wd'], p['bd'], 0)
    h = jax.nn.relu(_ref_conv2d(x, p['w1'], p['b1'], 0))
    h = jax.nn.relu(_ref_conv2d(h, p['w2'], p['b2'], 1))
    h = _ref_conv2d(h, p['w3'], p['b3'], 0)
    return jax.nn.relu(h + sc)


def ref_down2(params, x_prev, x, do_pool=True):
    xp = jnp.transpose(x_prev, (0, 2, 3, 1))
    xx = jnp.transpose(x, (0, 2, 3, 1))
    if do_pool:
        xx = jax.lax.reduce_window(xx, -jnp.inf, jax.lax.max,
                                   (1, 2, 2, 1), (1, 2, 2, 1), 'VALID')
    h = jnp.concatenate([xp, xx], axis=-1)
    h = _ref_bottleneck(params['block1'], h)
    h = _ref_bottleneck(params['block2'], h)
    return jnp.transpose(h, (0, 3, 1, 2))


# ------------------------------------ main -------------------------------------

if __name__ == "__main__":
    _roll_matches_jnp()   # resolve pltpu.roll's direction once, outside any trace

    key = jax.random.PRNGKey(0)
    kp, kx1, kx2 = jax.random.split(key, 3)

    # Down2(in_channel=8, out_channel=8): cat(4-ch x_prev, 4-ch pooled x) = 8 ch.
    in_channel, out_channel = 8, 8
    c_prev, c_x, H, W = 4, 4, 16, 16
    N = 2

    params = {
        'block1': init_bottleneck(jax.random.fold_in(kp, 1),
                                  in_channel, out_channel, 2),
        'block2': init_bottleneck(jax.random.fold_in(kp, 2),
                                  out_channel * 2, out_channel // 2, 2),
    }

    x_prev = jax.random.normal(kx1, (N, c_prev, H, W), jnp.float32)
    x = jax.random.normal(kx2, (N, c_x, 2 * H, 2 * W), jnp.float32)

    ref = np.asarray(ref_down2(params, x_prev, x, do_pool=True))

    # f32 compute path: strict correctness check.
    fwd_f32 = jax.jit(functools.partial(down2_forward, do_pool=True,
                                        compute_dtype=jnp.float32))
    out = jax.block_until_ready(fwd_f32(params, x_prev, x))
    assert out.shape == (N, out_channel, H, W), out.shape
    np.testing.assert_allclose(np.asarray(out), ref, atol=1e-2, rtol=1e-2)

    # Default bf16 MXU-operand path (the fast path on v6e/v7x): loose sanity check.
    fwd_bf16 = jax.jit(functools.partial(down2_forward, do_pool=True))
    out_bf = jax.block_until_ready(fwd_bf16(params, x_prev, x))
    assert out_bf.shape == out.shape
    err = float(np.max(np.abs(np.asarray(out_bf) - ref)))
    assert np.isfinite(err) and err < 0.3, err

    print("KERNEL_OK")
</pallas_src>

<mosaic_0001>
module attributes {stable_mosaic.version = 11 : i64} {
  func.func @probe(%arg0: memref<8x128xf32, #tpu.memory_space<vmem>>, %arg1: memref<8x128xf32, #tpu.memory_space<vmem>>) attributes {dimension_semantics = [], scalar_prefetch = 0 : i64, scratch_operands = 0 : i64, tpu.core_type = #tpu.core_type<tc>} {
    %c0 = arith.constant 0 : index
    %c0_0 = arith.constant 0 : index
    %0 = vector.load %arg0[%c0, %c0_0] : memref<8x128xf32, #tpu.memory_space<vmem>>, vector<8x128xf32>
    %c1_i32 = arith.constant 1 : i32
    %1 = tpu.dynamic_rotate %0 by %c1_i32 dim 1 : vector<8x128xf32>, i32 -> vector<8x128xf32>
    %c0_1 = arith.constant 0 : index
    %c0_2 = arith.constant 0 : index
    %2 = vector.load %arg1[%c0_1, %c0_2] : memref<8x128xf32, #tpu.memory_space<vmem>>, vector<8x128xf32>
    tpu.vector_store %arg1[%c0_1, %c0_2], %1 {strides = array<i32>} : memref<8x128xf32, #tpu.memory_space<vmem>>, vector<8x128xf32>,
    return
  }
}

</mosaic_0001>

<llo_original>
// kernel: tpu_custom_call.1
$region0: #{tpu_custom_call.1}
  #allocation0 [shape = 'u32[]', space=smem, size = 0x4, offset = 0x4, fixed_abs, tag = 'smem constant byte address 0x4 - core index']
  #allocation1 [shape = 'u32[72,128]{1,0:T(1,128)}', space=vmem, size = 0x9000, scoped, tag = 'internal scratch']
  %s0 = inlined_call_operand.hbm [shape: f32[8,128], index: 0, kind: input, shape index: {}]
  %s1 = inlined_call_operand.hbm [shape: f32[8,128], index: 1, kind: output, shape index: {}]
  %s2 = sld [smem:[#allocation0]]
  $region18: #{tpu_custom_call.1} parent=0
    _
  %s4 = ssub.s32 1, %s2
  %s5 = scalar_select 0, %s4, %s2
  $region1: #{tpu_custom_call.1} parent=0
    #allocation2 [shape = 'u8[4096]{0}', space=vmem, size = 0x1000, scoped, tag = 'input window, operand 0, single buffered']
    #allocation3 [shape = 's32[1]{0}', space=sflag, size = 0x4, scoped, tag = 'scoped memory for tpu_custom_call.1']
    #allocation4 [shape = 's32[1]{0}', space=sflag, size = 0x4, scoped, tag = 'scoped memory for tpu_custom_call.1']
    #allocation5 [shape = 'u8[4096]{0}', space=vmem, size = 0x1000, scoped, tag = 'output window, operand 0, single buffered']
    %6 = vsyncpa [#allocation3], 0
    %7 = vsyncpa [#allocation4], 0
    // Predicated region
    $region2: #{tpu_custom_call.1} parent=1 // pred_check
      _
    $region3: #{tpu_custom_call.1} parent=1 // pred_check_branch
      %9 = sbr.rel (0) target = $region5
    $region4: #{tpu_custom_call.1} parent=1 // pred_region
      %11 = vsyncadd [#allocation3], 0
      %s13 = sshll.u32 %s0, 4
      %s14 = int_to_ptr.hbm [resolvable:$true] %s13
      %s15 = sshll.u32 [#allocation2], 4
      %s16 = int_to_ptr.vmem [resolvable:$true] %s15
      %18 = dma.hbm_to_vmem [thread:$0]  %s14, 128, %s16, [#allocation3]
    $region5: #{tpu_custom_call.1} parent=1 // pred_fallthru
      _
    // Predicated region
    $region6: #{tpu_custom_call.1} parent=1 // pred_check
      _
    $region7: #{tpu_custom_call.1} parent=1 // pred_check_branch
      %20 = sbr.rel (0) target = $region9
    $region8: #{tpu_custom_call.1} parent=1 // pred_region
      %22 = dma.done [#allocation3], 128
    $region9: #{tpu_custom_call.1} parent=1 // pred_fallthru
      _
    %v23 = vld [vmem:[#allocation2] sm:$0xff]
    %24 = vrot.lane.b32.xlu0 %v23, 1
    %v25 = vpop.permute.xlu0 %24
    %26 = vst [vmem:[#allocation5] sm:$0xff] %v25
    // Predicated region
    $region10: #{tpu_custom_call.1} parent=1 // pred_check
      _
    $region11: #{tpu_custom_call.1} parent=1 // pred_check_branch
      %28 = sbr.rel (0) target = $region13
    $region12: #{tpu_custom_call.1} parent=1 // pred_region
      %30 = vsyncadd [#allocation4], 0
      %s32 = sshll.u32 [#allocation5], 4
      %s33 = int_to_ptr.vmem [resolvable:$true] %s32
      %s34 = sshll.u32 %s1, 4
      %s35 = int_to_ptr.hbm [resolvable:$true] %s34
      %37 = dma.vmem_to_hbm [thread:$0]  %s33, 128, %s35, [#allocation4]
    $region13: #{tpu_custom_call.1} parent=1 // pred_fallthru
      _
    // Predicated region
    $region14: #{tpu_custom_call.1} parent=1 // pred_check
      _
    $region15: #{tpu_custom_call.1} parent=1 // pred_check_branch
      %39 = sbr.rel (0) target = $region17
    $region16: #{tpu_custom_call.1} parent=1 // pred_region
      %41 = dma.done [#allocation4], 128
    $region17: #{tpu_custom_call.1} parent=1 // pred_fallthru
      _
    %42 = vsyncpa [#allocation3], 1
    %43 = vsyncpa [#allocation4], 1

</llo_original>
